<compile_context>
chip_gen: v5e
topology: v5e:2x2
jax: 0.10.0
libtpu: 0.0.40
codegen_flags: <defaults>
</compile_context>

<pallas_src>
import jax
import jax.numpy as jnp
from jax.experimental import pallas as pl
from jax.experimental.pallas import tpu as pltpu

N_CLASS = 16    # vocabulary size (n_class)
N_HIDDEN = 32   # RNN hidden size (n_hidden)
N_STEP = 8      # sequence length (both encoder and decoder)
BATCH = 1       # the PyTorch module assumes batch == 1
LANES = 128     # lane width of the packed weight slab / output slab


# -----------------------------------------------------------------------------
# Packed weight slab layout ([56, 128] f32, rows padded to a multiple of 8):
#   rows 0:H    lanes 0:H        whe = W_hh_enc^T          [32, 32]
#               lanes H:2H       whd = W_hh_dec^T          [32, 32]
#               lanes 2H:3H      wat = W_attn^T            [32, 32]
#               lanes 3H:3H+C    wod = W_out[:, :H]^T      [32, 16]
#               lanes 3H+C:3H+2C woc = W_out[:, H:]^T      [32, 16]
#   rows H:H+C  lanes 0:H        wie = W_ih_enc^T          [16, 32]
#               lanes H:2H       wid = W_ih_dec^T          [16, 32]
#   row  H+C    lanes 0:H        be  = b_ih_e + b_hh_e
#               lanes H:2H       bd  = b_ih_d + b_hh_d
#               lanes 2H:3H      bat = b_attn
#               lanes 3H:3H+C    bo  = b_out
#   remaining rows / lanes: zero padding
# -----------------------------------------------------------------------------


def _attention_kernel(enc_in_ref, dec_in_ref, h0_ref, w_ref, out_ref):
    s_enc, n_class = enc_in_ref.shape
    s_dec = dec_in_ref.shape[0]
    H = h0_ref.shape[1]
    C = n_class
    f32 = jnp.float32

    # ---- one-time weight loads (static slices of the single packed slab) ----
    whe = w_ref[0:H, 0:H]                       # [H, H]
    whd = w_ref[0:H, H:2 * H]                   # [H, H]
    wat = w_ref[0:H, 2 * H:3 * H]               # [H, H]
    wod = w_ref[0:H, 3 * H:3 * H + C]           # [H, C]
    woc = w_ref[0:H, 3 * H + C:3 * H + 2 * C]   # [H, C]
    wie = w_ref[H:H + C, 0:H]                   # [C, H]
    wid = w_ref[H:H + C, H:2 * H]               # [C, H]
    be = w_ref[H + C:H + C + 1, 0:H]            # [1, H]
    bd = w_ref[H + C:H + C + 1, H:2 * H]        # [1, H]
    bat = w_ref[H + C:H + C + 1, 2 * H:3 * H]   # [1, H]
    bo = w_ref[H + C:H + C + 1, 3 * H:3 * H + C]  # [1, C]

    # ---- batched input projections (hoisted off the serial critical path) ----
    enc_proj = jnp.dot(enc_in_ref[...], wie, preferred_element_type=f32) + be   # [S_enc, H]
    dec_proj = jnp.dot(dec_in_ref[...], wid, preferred_element_type=f32) + bd   # [S_dec, H]

    # ---------------- encoder recurrence (tanh), state kept in vregs ----------
    h = h0_ref[...]                                                             # [1, H]
    enc_rows = []
    for t in range(s_enc):                                                      # small, fully unrolled
        h = jnp.tanh(enc_proj[t:t + 1, :]
                     + jnp.dot(h, whe, preferred_element_type=f32))
        enc_rows.append(h)

    # ---------------- decoder recurrence (tanh) -------------------------------
    dec_rows = []
    for i in range(s_dec):
        h = jnp.tanh(dec_proj[i:i + 1, :]
                     + jnp.dot(h, whd, preferred_element_type=f32))
        dec_rows.append(h)

    enc_outputs = jnp.concatenate(enc_rows, axis=0)                             # [S_enc, H]
    dec_outputs = jnp.concatenate(dec_rows, axis=0)                             # [S_dec, H]

    # ---------------- batched attention + output ------------------------------
    attn_enc = jnp.dot(enc_outputs, wat, preferred_element_type=f32) + bat      # [S_enc, H]

    # scores[i, j] = dot(dec_output_i, attn(enc_output_j))   -> [S_dec, S_enc]
    scores = jax.lax.dot_general(dec_outputs, attn_enc,
                                 dimension_numbers=(((1,), (1,)), ((), ())),
                                 preferred_element_type=f32)

    m = jnp.max(scores, axis=-1, keepdims=True)
    e = jnp.exp(scores - m)
    w_attn = e / jnp.sum(e, axis=-1, keepdims=True)   # exact divide: rows sum to 1

    contexts = jnp.dot(w_attn, enc_outputs, preferred_element_type=f32)         # [S_dec, H]

    # out(cat(dec_output, context)) == dec_output @ Wd^T + context @ Wc^T + b
    model = (jnp.dot(dec_outputs, wod, preferred_element_type=f32)
             + jnp.dot(contexts, woc, preferred_element_type=f32)
             + bo)                                                              # [S_dec, C]

    # single lane-dense output slab: lanes [0:C] = model, [C:C+S_enc] = attn
    pad = jnp.zeros((s_dec, out_ref.shape[1] - C - s_enc), f32)
    out_ref[...] = jnp.concatenate([model, w_attn, pad], axis=1)


_VMEM_SPEC = pl.BlockSpec(memory_space=pltpu.MemorySpace.VMEM)


def prepare_kernel_params(p):
    """One-time repack of all weights/biases into a single [R, 128] f32 slab."""
    H = p["w_hh_e"].shape[0]
    C = p["w_ih_e"].shape[1]
    assert 3 * H + 2 * C <= LANES, "packed slab layout assumes 3H + 2C <= 128"
    rows = H + C + 1
    R = ((rows + 7) // 8) * 8                                   # sublane-align

    slab = jnp.zeros((R, LANES), jnp.float32)
    slab = slab.at[0:H, 0:H].set(p["w_hh_e"].T)
    slab = slab.at[0:H, H:2 * H].set(p["w_hh_d"].T)
    slab = slab.at[0:H, 2 * H:3 * H].set(p["w_attn"].T)
    slab = slab.at[0:H, 3 * H:3 * H + C].set(p["w_out"][:, :H].T)
    slab = slab.at[0:H, 3 * H + C:3 * H + 2 * C].set(p["w_out"][:, H:].T)
    slab = slab.at[H:H + C, 0:H].set(p["w_ih_e"].T)
    slab = slab.at[H:H + C, H:2 * H].set(p["w_ih_d"].T)
    slab = slab.at[H + C, 0:H].set(p["b_ih_e"] + p["b_hh_e"])
    slab = slab.at[H + C, H:2 * H].set(p["b_ih_d"] + p["b_hh_d"])
    slab = slab.at[H + C, 2 * H:3 * H].set(p["b_attn"])
    slab = slab.at[H + C, 3 * H:3 * H + C].set(p["b_out"])
    return slab.astype(jnp.float32)


def attention_forward(enc_inputs, hidden, dec_inputs, w_slab):
    """enc_inputs/dec_inputs: [1, n_step, n_class]; hidden: [1, 1, n_hidden].
    w_slab: output of prepare_kernel_params()."""
    enc_t = enc_inputs[0].astype(jnp.float32)                   # [S_enc, C]
    dec_t = dec_inputs[0].astype(jnp.float32)                   # [S_dec, C]
    h0 = hidden[0].astype(jnp.float32)                          # [1, H]

    s_enc, n_class = enc_t.shape
    s_dec = dec_t.shape[0]

    out = pl.pallas_call(
        _attention_kernel,
        in_specs=[_VMEM_SPEC] * 4,
        out_specs=_VMEM_SPEC,
        out_shape=jax.ShapeDtypeStruct((s_dec, LANES), jnp.float32),
    )(enc_t, dec_t, h0, w_slab)

    model = out[:, :n_class]                                    # [S_dec, C]
    attn = out[:, n_class:n_class + s_enc]                      # [S_dec, S_enc]
    return model, attn


def init_params(key, n_class, n_hidden):
    ks = jax.random.split(key, 12)

    def u(k, shape, fan_in):
        bound = 1.0 / jnp.sqrt(jnp.float32(fan_in))
        return jax.random.uniform(k, shape, jnp.float32, -bound, bound)

    return dict(
        w_ih_e=u(ks[0], (n_hidden, n_class), n_hidden),
        w_hh_e=u(ks[1], (n_hidden, n_hidden), n_hidden),
        b_ih_e=u(ks[2], (n_hidden,), n_hidden),
        b_hh_e=u(ks[3], (n_hidden,), n_hidden),
        w_ih_d=u(ks[4], (n_hidden, n_class), n_hidden),
        w_hh_d=u(ks[5], (n_hidden, n_hidden), n_hidden),
        b_ih_d=u(ks[6], (n_hidden,), n_hidden),
        b_hh_d=u(ks[7], (n_hidden,), n_hidden),
        w_attn=u(ks[8], (n_hidden, n_hidden), n_hidden),
        b_attn=u(ks[9], (n_hidden,), n_hidden),
        w_out=u(ks[10], (n_class, 2 * n_hidden), 2 * n_hidden),
        b_out=u(ks[11], (n_class,), 2 * n_hidden),
    )


def reference_forward(enc_inputs, hidden, dec_inputs, p):
    """Pure-JAX reference mirroring the PyTorch forward exactly."""
    enc_t = jnp.transpose(enc_inputs, (1, 0, 2))[:, 0, :]
    dec_t = jnp.transpose(dec_inputs, (1, 0, 2))[:, 0, :]
    h = hidden[0, 0]
    enc_outs = []
    for t in range(enc_t.shape[0]):
        h = jnp.tanh(p["w_ih_e"] @ enc_t[t] + p["b_ih_e"] + p["w_hh_e"] @ h + p["b_hh_e"])
        enc_outs.append(h)
    enc_outputs = jnp.stack(enc_outs)
    outs, attns = [], []
    for i in range(dec_t.shape[0]):
        h = jnp.tanh(p["w_ih_d"] @ dec_t[i] + p["b_ih_d"] + p["w_hh_d"] @ h + p["b_hh_d"])
        scores = (enc_outputs @ p["w_attn"].T + p["b_attn"]) @ h
        w = jax.nn.softmax(scores)
        ctx = w @ enc_outputs
        outs.append(p["w_out"] @ jnp.concatenate([h, ctx]) + p["b_out"])
        attns.append(w)
    return jnp.stack(outs), jnp.stack(attns)


if __name__ == "__main__":
    key = jax.random.PRNGKey(0)
    k_p, k_e, k_d = jax.random.split(key, 3)

    params = init_params(k_p, N_CLASS, N_HIDDEN)
    w_slab = prepare_kernel_params(params)            # one-time weight repack

    enc_inputs = jax.random.normal(k_e, (BATCH, N_STEP, N_CLASS), jnp.float32)
    dec_inputs = jax.random.normal(k_d, (BATCH, N_STEP, N_CLASS), jnp.float32)
    hidden = jnp.zeros((1, BATCH, N_HIDDEN), jnp.float32)

    model, attn = attention_forward(enc_inputs, hidden, dec_inputs, w_slab)
    model = jax.block_until_ready(model)
    attn = jax.block_until_ready(attn)

    model_ref, attn_ref = reference_forward(enc_inputs, hidden, dec_inputs, params)
    assert model.shape == (N_STEP, N_CLASS) and attn.shape == (N_STEP, N_STEP)
    # tolerance covers default TPU matmul precision (bf16 MXU passes) across the
    # 16 chained tanh steps; the softmax now uses an exact divide.
    assert jnp.allclose(model, model_ref, atol=2e-3, rtol=2e-3)
    assert jnp.allclose(attn, attn_ref, atol=2e-3, rtol=2e-3)

    print("KERNEL_OK")
</pallas_src>

<mosaic_0001>
module attributes {stable_mosaic.version = 11 : i64} {
  func.func @_attention_kernel(%arg0: memref<8x16xf32, #tpu.memory_space<vmem>>, %arg1: memref<8x16xf32, #tpu.memory_space<vmem>>, %arg2: memref<1x32xf32, #tpu.memory_space<vmem>>, %arg3: memref<56x128xf32, #tpu.memory_space<vmem>>, %arg4: memref<8x128xf32, #tpu.memory_space<vmem>>) attributes {dimension_semantics = [], scalar_prefetch = 0 : i64, scratch_operands = 0 : i64, tpu.core_type = #tpu.core_type<tc>} {
    %c0 = arith.constant 0 : index
    %c0_0 = arith.constant 0 : index
    %0 = vector.load %arg3[%c0, %c0_0] : memref<56x128xf32, #tpu.memory_space<vmem>>, vector<32x32xf32>
    %c0_1 = arith.constant 0 : index
    %c32 = arith.constant 32 : index
    %1 = vector.load %arg3[%c0_1, %c32] : memref<56x128xf32, #tpu.memory_space<vmem>>, vector<32x32xf32>
    %c0_2 = arith.constant 0 : index
    %c64 = arith.constant 64 : index
    %2 = vector.load %arg3[%c0_2, %c64] : memref<56x128xf32, #tpu.memory_space<vmem>>, vector<32x32xf32>
    %c0_3 = arith.constant 0 : index
    %c96 = arith.constant 96 : index
    %3 = vector.load %arg3[%c0_3, %c96] : memref<56x128xf32, #tpu.memory_space<vmem>>, vector<32x16xf32>
    %c0_4 = arith.constant 0 : index
    %c112 = arith.constant 112 : index
    %4 = vector.load %arg3[%c0_4, %c112] : memref<56x128xf32, #tpu.memory_space<vmem>>, vector<32x16xf32>
    %c32_5 = arith.constant 32 : index
    %c0_6 = arith.constant 0 : index
    %5 = vector.load %arg3[%c32_5, %c0_6] : memref<56x128xf32, #tpu.memory_space<vmem>>, vector<16x32xf32>
    %c32_7 = arith.constant 32 : index
    %c32_8 = arith.constant 32 : index
    %6 = vector.load %arg3[%c32_7, %c32_8] : memref<56x128xf32, #tpu.memory_space<vmem>>, vector<16x32xf32>
    %c48 = arith.constant 48 : index
    %c0_9 = arith.constant 0 : index
    %7 = vector.load %arg3[%c48, %c0_9] : memref<56x128xf32, #tpu.memory_space<vmem>>, vector<1x32xf32>
    %c48_10 = arith.constant 48 : index
    %c32_11 = arith.constant 32 : index
    %8 = vector.load %arg3[%c48_10, %c32_11] : memref<56x128xf32, #tpu.memory_space<vmem>>, vector<1x32xf32>
    %c48_12 = arith.constant 48 : index
    %c64_13 = arith.constant 64 : index
    %9 = vector.load %arg3[%c48_12, %c64_13] : memref<56x128xf32, #tpu.memory_space<vmem>>, vector<1x32xf32>
    %c48_14 = arith.constant 48 : index
    %c96_15 = arith.constant 96 : index
    %10 = vector.load %arg3[%c48_14, %c96_15] : memref<56x128xf32, #tpu.memory_space<vmem>>, vector<1x16xf32>
    %c0_16 = arith.constant 0 : index
    %c0_17 = arith.constant 0 : index
    %11 = vector.load %arg0[%c0_16, %c0_17] : memref<8x16xf32, #tpu.memory_space<vmem>>, vector<8x16xf32>
    %cst = arith.constant dense<0.000000e+00> : vector<8x32xf32>
    %12 = tpu.matmul %11, %5, %cst {dimension_numbers = #tpu.dot_dimension_numbers<[1], [0], [0], [1], [0, 0, 1, 1], [], []>} : vector<8x16xf32>, vector<16x32xf32>, vector<8x32xf32> -> vector<8x32xf32>
    %13 = vector.broadcast %7 : vector<1x32xf32> to vector<8x32xf32>
    %14 = arith.addf %12, %13 : vector<8x32xf32>
    %c0_18 = arith.constant 0 : index
    %c0_19 = arith.constant 0 : index
    %15 = vector.load %arg1[%c0_18, %c0_19] : memref<8x16xf32, #tpu.memory_space<vmem>>, vector<8x16xf32>
    %cst_20 = arith.constant dense<0.000000e+00> : vector<8x32xf32>
    %16 = tpu.matmul %15, %6, %cst_20 {dimension_numbers = #tpu.dot_dimension_numbers<[1], [0], [0], [1], [0, 0, 1, 1], [], []>} : vector<8x16xf32>, vector<16x32xf32>, vector<8x32xf32> -> vector<8x32xf32>
    %17 = vector.broadcast %8 : vector<1x32xf32> to vector<8x32xf32>
    %18 = arith.addf %16, %17 : vector<8x32xf32>
    %c0_21 = arith.constant 0 : index
    %c0_22 = arith.constant 0 : index
    %19 = vector.load %arg2[%c0_21, %c0_22] : memref<1x32xf32, #tpu.memory_space<vmem>>, vector<1x32xf32>
    %20 = vector.extract_strided_slice %14 {offsets = [0, 0], sizes = [1, 32], strides = [1, 1]} : vector<8x32xf32> to vector<1x32xf32>
    %cst_23 = arith.constant dense<0.000000e+00> : vector<1x32xf32>
    %21 = tpu.matmul %19, %0, %cst_23 {dimension_numbers = #tpu.dot_dimension_numbers<[1], [0], [0], [1], [0, 0, 1, 1], [], []>} : vector<1x32xf32>, vector<32x32xf32>, vector<1x32xf32> -> vector<1x32xf32>
    %22 = arith.addf %20, %21 : vector<1x32xf32>
    %23 = math.tanh %22 : vector<1x32xf32>
    %24 = vector.extract_strided_slice %14 {offsets = [1, 0], sizes = [1, 32], strides = [1, 1]} : vector<8x32xf32> to vector<1x32xf32>
    %cst_24 = arith.constant dense<0.000000e+00> : vector<1x32xf32>
    %25 = tpu.matmul %23, %0, %cst_24 {dimension_numbers = #tpu.dot_dimension_numbers<[1], [0], [0], [1], [0, 0, 1, 1], [], []>} : vector<1x32xf32>, vector<32x32xf32>, vector<1x32xf32> -> vector<1x32xf32>
    %26 = arith.addf %24, %25 : vector<1x32xf32>
    %27 = math.tanh %26 : vector<1x32xf32>
    %28 = vector.extract_strided_slice %14 {offsets = [2, 0], sizes = [1, 32], strides = [1, 1]} : vector<8x32xf32> to vector<1x32xf32>
    %cst_25 = arith.constant dense<0.000000e+00> : vector<1x32xf32>
    %29 = tpu.matmul %27, %0, %cst_25 {dimension_numbers = #tpu.dot_dimension_numbers<[1], [0], [0], [1], [0, 0, 1, 1], [], []>} : vector<1x32xf32>, vector<32x32xf32>, vector<1x32xf32> -> vector<1x32xf32>
    %30 = arith.addf %28, %29 : vector<1x32xf32>
    %31 = math.tanh %30 : vector<1x32xf32>
    %32 = vector.extract_strided_slice %14 {offsets = [3, 0], sizes = [1, 32], strides = [1, 1]} : vector<8x32xf32> to vector<1x32xf32>
    %cst_26 = arith.constant dense<0.000000e+00> : vector<1x32xf32>
    %33 = tpu.matmul %31, %0, %cst_26 {dimension_numbers = #tpu.dot_dimension_numbers<[1], [0], [0], [1], [0, 0, 1, 1], [], []>} : vector<1x32xf32>, vector<32x32xf32>, vector<1x32xf32> -> vector<1x32xf32>
    %34 = arith.addf %32, %33 : vector<1x32xf32>
    %35 = math.tanh %34 : vector<1x32xf32>
    %36 = vector.extract_strided_slice %14 {offsets = [4, 0], sizes = [1, 32], strides = [1, 1]} : vector<8x32xf32> to vector<1x32xf32>
    %cst_27 = arith.constant dense<0.000000e+00> : vector<1x32xf32>
    %37 = tpu.matmul %35, %0, %cst_27 {dimension_numbers = #tpu.dot_dimension_numbers<[1], [0], [0], [1], [0, 0, 1, 1], [], []>} : vector<1x32xf32>, vector<32x32xf32>, vector<1x32xf32> -> vector<1x32xf32>
    %38 = arith.addf %36, %37 : vector<1x32xf32>
    %39 = math.tanh %38 : vector<1x32xf32>
    %40 = vector.extract_strided_slice %14 {offsets = [5, 0], sizes = [1, 32], strides = [1, 1]} : vector<8x32xf32> to vector<1x32xf32>
    %cst_28 = arith.constant dense<0.000000e+00> : vector<1x32xf32>
    %41 = tpu.matmul %39, %0, %cst_28 {dimension_numbers = #tpu.dot_dimension_numbers<[1], [0], [0], [1], [0, 0, 1, 1], [], []>} : vector<1x32xf32>, vector<32x32xf32>, vector<1x32xf32> -> vector<1x32xf32>
    %42 = arith.addf %40, %41 : vector<1x32xf32>
    %43 = math.tanh %42 : vector<1x32xf32>
    %44 = vector.extract_strided_slice %14 {offsets = [6, 0], sizes = [1, 32], strides = [1, 1]} : vector<8x32xf32> to vector<1x32xf32>
    %cst_29 = arith.constant dense<0.000000e+00> : vector<1x32xf32>
    %45 = tpu.matmul %43, %0, %cst_29 {dimension_numbers = #tpu.dot_dimension_numbers<[1], [0], [0], [1], [0, 0, 1, 1], [], []>} : vector<1x32xf32>, vector<32x32xf32>, vector<1x32xf32> -> vector<1x32xf32>
    %46 = arith.addf %44, %45 : vector<1x32xf32>
    %47 = math.tanh %46 : vector<1x32xf32>
    %48 = vector.extract_strided_slice %14 {offsets = [7, 0], sizes = [1, 32], strides = [1, 1]} : vector<8x32xf32> to vector<1x32xf32>
    %cst_30 = arith.constant dense<0.000000e+00> : vector<1x32xf32>
    %49 = tpu.matmul %47, %0, %cst_30 {dimension_numbers = #tpu.dot_dimension_numbers<[1], [0], [0], [1], [0, 0, 1, 1], [], []>} : vector<1x32xf32>, vector<32x32xf32>, vector<1x32xf32> -> vector<1x32xf32>
    %50 = arith.addf %48, %49 : vector<1x32xf32>
    %51 = math.tanh %50 : vector<1x32xf32>
    %52 = vector.extract_strided_slice %18 {offsets = [0, 0], sizes = [1, 32], strides = [1, 1]} : vector<8x32xf32> to vector<1x32xf32>
    %cst_31 = arith.constant dense<0.000000e+00> : vector<1x32xf32>
    %53 = tpu.matmul %51, %1, %cst_31 {dimension_numbers = #tpu.dot_dimension_numbers<[1], [0], [0], [1], [0, 0, 1, 1], [], []>} : vector<1x32xf32>, vector<32x32xf32>, vector<1x32xf32> -> vector<1x32xf32>
    %54 = arith.addf %52, %53 : vector<1x32xf32>
    %55 = math.tanh %54 : vector<1x32xf32>
    %56 = vector.extract_strided_slice %18 {offsets = [1, 0], sizes = [1, 32], strides = [1, 1]} : vector<8x32xf32> to vector<1x32xf32>
    %cst_32 = arith.constant dense<0.000000e+00> : vector<1x32xf32>
    %57 = tpu.matmul %55, %1, %cst_32 {dimension_numbers = #tpu.dot_dimension_numbers<[1], [0], [0], [1], [0, 0, 1, 1], [], []>} : vector<1x32xf32>, vector<32x32xf32>, vector<1x32xf32> -> vector<1x32xf32>
    %58 = arith.addf %56, %57 : vector<1x32xf32>
    %59 = math.tanh %58 : vector<1x32xf32>
    %60 = vector.extract_strided_slice %18 {offsets = [2, 0], sizes = [1, 32], strides = [1, 1]} : vector<8x32xf32> to vector<1x32xf32>
    %cst_33 = arith.constant dense<0.000000e+00> : vector<1x32xf32>
    %61 = tpu.matmul %59, %1, %cst_33 {dimension_numbers = #tpu.dot_dimension_numbers<[1], [0], [0], [1], [0, 0, 1, 1], [], []>} : vector<1x32xf32>, vector<32x32xf32>, vector<1x32xf32> -> vector<1x32xf32>
    %62 = arith.addf %60, %61 : vector<1x32xf32>
    %63 = math.tanh %62 : vector<1x32xf32>
    %64 = vector.extract_strided_slice %18 {offsets = [3, 0], sizes = [1, 32], strides = [1, 1]} : vector<8x32xf32> to vector<1x32xf32>
    %cst_34 = arith.constant dense<0.000000e+00> : vector<1x32xf32>
    %65 = tpu.matmul %63, %1, %cst_34 {dimension_numbers = #tpu.dot_dimension_numbers<[1], [0], [0], [1], [0, 0, 1, 1], [], []>} : vector<1x32xf32>, vector<32x32xf32>, vector<1x32xf32> -> vector<1x32xf32>
    %66 = arith.addf %64, %65 : vector<1x32xf32>
    %67 = math.tanh %66 : vector<1x32xf32>
    %68 = vector.extract_strided_slice %18 {offsets = [4, 0], sizes = [1, 32], strides = [1, 1]} : vector<8x32xf32> to vector<1x32xf32>
    %cst_35 = arith.constant dense<0.000000e+00> : vector<1x32xf32>
    %69 = tpu.matmul %67, %1, %cst_35 {dimension_numbers = #tpu.dot_dimension_numbers<[1], [0], [0], [1], [0, 0, 1, 1], [], []>} : vector<1x32xf32>, vector<32x32xf32>, vector<1x32xf32> -> vector<1x32xf32>
    %70 = arith.addf %68, %69 : vector<1x32xf32>
    %71 = math.tanh %70 : vector<1x32xf32>
    %72 = vector.extract_strided_slice %18 {offsets = [5, 0], sizes = [1, 32], strides = [1, 1]} : vector<8x32xf32> to vector<1x32xf32>
    %cst_36 = arith.constant dense<0.000000e+00> : vector<1x32xf32>
    %73 = tpu.matmul %71, %1, %cst_36 {dimension_numbers = #tpu.dot_dimension_numbers<[1], [0], [0], [1], [0, 0, 1, 1], [], []>} : vector<1x32xf32>, vector<32x32xf32>, vector<1x32xf32> -> vector<1x32xf32>
    %74 = arith.addf %72, %73 : vector<1x32xf32>
    %75 = math.tanh %74 : vector<1x32xf32>
    %76 = vector.extract_strided_slice %18 {offsets = [6, 0], sizes = [1, 32], strides = [1, 1]} : vector<8x32xf32> to vector<1x32xf32>
    %cst_37 = arith.constant dense<0.000000e+00> : vector<1x32xf32>
    %77 = tpu.matmul %75, %1, %cst_37 {dimension_numbers = #tpu.dot_dimension_numbers<[1], [0], [0], [1], [0, 0, 1, 1], [], []>} : vector<1x32xf32>, vector<32x32xf32>, vector<1x32xf32> -> vector<1x32xf32>
    %78 = arith.addf %76, %77 : vector<1x32xf32>
    %79 = math.tanh %78 : vector<1x32xf32>
    %80 = vector.extract_strided_slice %18 {offsets = [7, 0], sizes = [1, 32], strides = [1, 1]} : vector<8x32xf32> to vector<1x32xf32>
    %cst_38 = arith.constant dense<0.000000e+00> : vector<1x32xf32>
    %81 = tpu.matmul %79, %1, %cst_38 {dimension_numbers = #tpu.dot_dimension_numbers<[1], [0], [0], [1], [0, 0, 1, 1], [], []>} : vector<1x32xf32>, vector<32x32xf32>, vector<1x32xf32> -> vector<1x32xf32>
    %82 = arith.addf %80, %81 : vector<1x32xf32>
    %83 = math.tanh %82 : vector<1x32xf32>
    %84 = tpu.concatenate %23, %27, %31, %35, %39, %43, %47, %51 in 0 : vector<1x32xf32>, vector<1x32xf32>, vector<1x32xf32>, vector<1x32xf32>, vector<1x32xf32>, vector<1x32xf32>, vector<1x32xf32>, vector<1x32xf32> -> vector<8x32xf32>
    %85 = tpu.concatenate %55, %59, %63, %67, %71, %75, %79, %83 in 0 : vector<1x32xf32>, vector<1x32xf32>, vector<1x32xf32>, vector<1x32xf32>, vector<1x32xf32>, vector<1x32xf32>, vector<1x32xf32>, vector<1x32xf32> -> vector<8x32xf32>
    %cst_39 = arith.constant dense<0.000000e+00> : vector<8x32xf32>
    %86 = tpu.matmul %84, %2, %cst_39 {dimension_numbers = #tpu.dot_dimension_numbers<[1], [0], [0], [1], [0, 0, 1, 1], [], []>} : vector<8x32xf32>, vector<32x32xf32>, vector<8x32xf32> -> vector<8x32xf32>
    %87 = vector.broadcast %9 : vector<1x32xf32> to vector<8x32xf32>
    %88 = arith.addf %86, %87 : vector<8x32xf32>
    %cst_40 = arith.constant dense<0.000000e+00> : vector<8x8xf32>
    %89 = tpu.matmul %85, %88, %cst_40 {dimension_numbers = #tpu.dot_dimension_numbers<[1], [1], [0], [0], [0, 0, 1, 0], [], []>} : vector<8x32xf32>, vector<8x32xf32>, vector<8x8xf32> -> vector<8x8xf32>
    %cst_41 = arith.constant dense<0xFF800000> : vector<8xf32>
    %90 = vector.multi_reduction <maximumf>, %89, %cst_41 [1] : vector<8x8xf32> to vector<8xf32>
    %91 = vector.shape_cast %90 : vector<8xf32> to vector<8x1xf32>
    %92 = vector.broadcast %91 : vector<8x1xf32> to vector<8x8xf32>
    %93 = arith.subf %89, %92 : vector<8x8xf32>
    %94 = math.exp %93 : vector<8x8xf32>
    %cst_42 = arith.constant dense<0.000000e+00> : vector<8xf32>
    %95 = vector.multi_reduction <add>, %94, %cst_42 [1] : vector<8x8xf32> to vector<8xf32>
    %96 = vector.shape_cast %95 : vector<8xf32> to vector<8x1xf32>
    %97 = vector.broadcast %96 : vector<8x1xf32> to vector<8x8xf32>
    %98 = arith.divf %94, %97 : vector<8x8xf32>
    %cst_43 = arith.constant dense<0.000000e+00> : vector<8x32xf32>
    %99 = tpu.matmul %98, %84, %cst_43 {dimension_numbers = #tpu.dot_dimension_numbers<[1], [0], [0], [1], [0, 0, 1, 1], [], []>} : vector<8x8xf32>, vector<8x32xf32>, vector<8x32xf32> -> vector<8x32xf32>
    %cst_44 = arith.constant dense<0.000000e+00> : vector<8x16xf32>
    %100 = tpu.matmul %85, %3, %cst_44 {dimension_numbers = #tpu.dot_dimension_numbers<[1], [0], [0], [1], [0, 0, 1, 1], [], []>} : vector<8x32xf32>, vector<32x16xf32>, vector<8x16xf32> -> vector<8x16xf32>
    %cst_45 = arith.constant dense<0.000000e+00> : vector<8x16xf32>
    %101 = tpu.matmul %99, %4, %cst_45 {dimension_numbers = #tpu.dot_dimension_numbers<[1], [0], [0], [1], [0, 0, 1, 1], [], []>} : vector<8x32xf32>, vector<32x16xf32>, vector<8x16xf32> -> vector<8x16xf32>
    %102 = arith.addf %100, %101 : vector<8x16xf32>
    %103 = vector.broadcast %10 : vector<1x16xf32> to vector<8x16xf32>
    %104 = arith.addf %102, %103 : vector<8x16xf32>
    %cst_46 = arith.constant 0.000000e+00 : f32
    %105 = vector.broadcast %cst_46 : f32 to vector<8x104xf32>
    %106 = tpu.concatenate %104, %98, %105 in 1 : vector<8x16xf32>, vector<8x8xf32>, vector<8x104xf32> -> vector<8x128xf32>
    %c0_47 = arith.constant 0 : index
    %c0_48 = arith.constant 0 : index
    %107 = vector.load %arg4[%c0_47, %c0_48] : memref<8x128xf32, #tpu.memory_space<vmem>>, vector<8x128xf32>
    tpu.vector_store %arg4[%c0_47, %c0_48], %106 {strides = array<i32>} : memref<8x128xf32, #tpu.memory_space<vmem>>, vector<8x128xf32>,
    return
  }
}

</mosaic_0001>

<llo_original>
// kernel: tpu_custom_call.1
$region0: #{tpu_custom_call.1}
  #allocation0 [shape = 'u32[]', space=smem, size = 0x4, offset = 0x4, fixed_abs, tag = 'smem constant byte address 0x4 - core index']
  #allocation1 [shape = 'u32[72,128]{1,0:T(1,128)}', space=vmem, size = 0x9000, scoped, tag = 'internal scratch']
  %s0 = inlined_call_operand.hbm [shape: f32[8,16], index: 0, kind: input, shape index: {}]
  %s1 = inlined_call_operand.hbm [shape: f32[8,16], index: 1, kind: input, shape index: {}]
  %s2 = inlined_call_operand.vmem [shape: f32[1,32], index: 2, kind: input, shape index: {}]
  %s3 = inlined_call_operand.hbm [shape: f32[56,128], index: 3, kind: input, shape index: {}]
  %s4 = inlined_call_operand.hbm [shape: f32[8,128], index: 4, kind: output, shape index: {}]
  %s5 = sld [smem:[#allocation0]]
  $region38: #{tpu_custom_call.1} parent=0
    _
  %s7 = ssub.s32 1, %s5
  %s8 = scalar_select 0, %s7, %s5
  $region1: #{tpu_custom_call.1} parent=0
    #allocation2 [shape = 'u8[4096]{0}', space=vmem, size = 0x1000, scoped, tag = 'input window, operand 0, single buffered']
    #allocation3 [shape = 's32[1]{0}', space=sflag, size = 0x4, scoped, tag = 'scoped memory for tpu_custom_call.1']
    #allocation4 [shape = 's32[1]{0}', space=sflag, size = 0x4, scoped, tag = 'scoped memory for tpu_custom_call.1']
    #allocation5 [shape = 'u8[4096]{0}', space=vmem, size = 0x1000, scoped, tag = 'input window, operand 1, single buffered']
    #allocation6 [shape = 's32[1]{0}', space=sflag, size = 0x4, scoped, tag = 'scoped memory for tpu_custom_call.1']
    #allocation7 [shape = 'u8[28672]{0}', space=vmem, size = 0x7000, scoped, tag = 'input window, operand 3, single buffered']
    #allocation8 [shape = 'u8[4096]{0}', space=vmem, size = 0x1000, scoped, tag = 'output window, operand 0, single buffered']
    %9 = vsyncpa [#allocation3], 0
    %10 = vsyncpa [#allocation6], 0
    %11 = vsyncpa [#allocation4], 0
    // Predicated region
    $region2: #{tpu_custom_call.1} parent=1 // pred_check
      _
    $region3: #{tpu_custom_call.1} parent=1 // pred_check_branch
      %13 = sbr.rel (0) target = $region5
    $region4: #{tpu_custom_call.1} parent=1 // pred_region
      %15 = vsyncadd [#allocation3], 0
      %s17 = sshll.u32 %s0, 4
      %s18 = int_to_ptr.hbm [resolvable:$true] %s17
      %s19 = sshll.u32 [#allocation2], 4
      %s20 = int_to_ptr.vmem [resolvable:$true] %s19
      %22 = dma.hbm_to_vmem [thread:$0]  %s18, 128, %s20, [#allocation3]
    $region5: #{tpu_custom_call.1} parent=1 // pred_fallthru
      _
    // Predicated region
    $region6: #{tpu_custom_call.1} parent=1 // pred_check
      _
    $region7: #{tpu_custom_call.1} parent=1 // pred_check_branch
      %24 = sbr.rel (0) target = $region9
    $region8: #{tpu_custom_call.1} parent=1 // pred_region
      %26 = vsyncadd [#allocation6], 0
      %s28 = sshll.u32 %s1, 4
      %s29 = int_to_ptr.hbm [resolvable:$true] %s28
      %s30 = sshll.u32 [#allocation5], 4
      %s31 = int_to_ptr.vmem [resolvable:$true] %s30
      %33 = dma.hbm_to_vmem [thread:$0]  %s29, 128, %s31, [#allocation6]
    $region9: #{tpu_custom_call.1} parent=1 // pred_fallthru
      _
    // Predicated region
    $region10: #{tpu_custom_call.1} parent=1 // pred_check
      _
    $region11: #{tpu_custom_call.1} parent=1 // pred_check_branch
      %35 = sbr.rel (0) target = $region13
    $region12: #{tpu_custom_call.1} parent=1 // pred_region
      _
    $region13: #{tpu_custom_call.1} parent=1 // pred_fallthru
      _
    // Predicated region
    $region14: #{tpu_custom_call.1} parent=1 // pred_check
      _
    $region15: #{tpu_custom_call.1} parent=1 // pred_check_branch
      %37 = sbr.rel (0) target = $region17
    $region16: #{tpu_custom_call.1} parent=1 // pred_region
      %39 = vsyncadd [#allocation6], 0
      %s40 = sshll.u32 %s3, 4
      %s41 = int_to_ptr.hbm [resolvable:$true] %s40
      %s42 = sshll.u32 [#allocation7], 4
      %s43 = int_to_ptr.vmem [resolvable:$true] %s42
      %48 = dma.hbm_to_vmem [thread:$0]  %s41, 896, %s43, [#allocation6], 128, 128, 8
    $region17: #{tpu_custom_call.1} parent=1 // pred_fallthru
      _
    // Predicated region
    $region18: #{tpu_custom_call.1} parent=1 // pred_check
      _
    $region19: #{tpu_custom_call.1} parent=1 // pred_check_branch
      %50 = sbr.rel (0) target = $region21
    $region20: #{tpu_custom_call.1} parent=1 // pred_region
      %52 = dma.done [#allocation3], 128
    $region21: #{tpu_custom_call.1} parent=1 // pred_fallthru
      _
    // Predicated region
    $region22: #{tpu_custom_call.1} parent=1 // pred_check
      _
    $region23: #{tpu_custom_call.1} parent=1 // pred_check_branch
      %54 = sbr.rel (0) target = $region25
    $region24: #{tpu_custom_call.1} parent=1 // pred_region
      %56 = dma.done [#allocation6], 128
    $region25: #{tpu_custom_call.1} parent=1 // pred_fallthru
      _
    // Predicated region
    $region26: #{tpu_custom_call.1} parent=1 // pred_check
      _
    $region27: #{tpu_custom_call.1} parent=1 // pred_check_branch
      %58 = sbr.rel (0) target = $region29
    $region28: #{tpu_custom_call.1} parent=1 // pred_region
      %60 = dma.done [#allocation6], 896
    $region29: #{tpu_custom_call.1} parent=1 // pred_fallthru
      _
    %v61 = vld [vmem:[#allocation7] sm:$0xff]
    %v62 = vld [vmem:[#allocation7 + $0x8] sm:$0xff]
    %v63 = vld [vmem:[#allocation7 + $0x10] sm:$0xff]
    %v64 = vld [vmem:[#allocation7 + $0x18] sm:$0xff]
    %v65 = vld [vmem:[#allocation7 + $0x20] sm:$0xff]
    %v66 = vld [vmem:[#allocation7 + $0x28] sm:$0xff]
    %v67 = vld [vmem:[#allocation7 + $0x30] sm:$0x1]
    %v68 = vld [vmem:[#allocation2] sm:$0xff]
    %v69 = vperm.slane %v67, 0
    %vm70 = vcmask 130048
    %v72 = vsel %vm70, %v68, 0
    %74 = vmatpush.msra.mxu0 0.0
    %75 = vmatpush.msra.mxu0 0.0
    %76 = vmatpush.msra.mxu0 0.0
    %77 = vmatpush.msra.mxu0 0.0
    %78 = vmatpush.msra.mxu0 0.0
    %79 = vmatpush.msra.mxu0 0.0
    %80 = vmatpush.msra.mxu0 0.0
    %81 = vmatpush.msra.mxu0 0.0
    %82 = vmatpush.msra.mxu0 0.0
    %83 = vmatpush.msra.mxu0 0.0
    %84 = vmatpush.msra.mxu0 0.0
    %85 = vmatpush.msra.mxu0 0.0
    %86 = vmatpush.msra.mxu0 0.0
    %87 = vmatpush.msra.mxu0 0.0
    %88 = vmatpush.msra.mxu0 %v66
    %89 = vmatpush.msra.mxu0 %v65
    %90 = vmatmul.f32.gmra.mxu0 %v72
    %v91 = vpop.f32.mrf.mxu0
    %v92 = vadd.f32 %v69, %v91
    %93 = vdwg.mxu0
    %v94 = vld [vmem:[#allocation5] sm:$0xff]
    %97 = vrot.lane.b32.xlu0 %v65, 96
    %v98 = vpop.permute.xlu0 %97
    %99 = vrot.lane.b32.xlu0 %v66, 96
    %v100 = vpop.permute.xlu0 %99
    %104 = vrot.lane.b32.xlu0 %v69, 96
    %v105 = vpop.permute.xlu0 %104
    %v108 = vsel %vm70, %v94, 0
    %110 = vmatpush.msra.mxu0 0.0
    %111 = vmatpush.msra.mxu0 0.0
    %112 = vmatpush.msra.mxu0 0.0
    %113 = vmatpush.msra.mxu0 0.0
    %114 = vmatpush.msra.mxu0 0.0
    %115 = vmatpush.msra.mxu0 0.0
    %116 = vmatpush.msra.mxu0 0.0
    %117 = vmatpush.msra.mxu0 0.0
    %118 = vmatpush.msra.mxu0 0.0
    %119 = vmatpush.msra.mxu0 0.0
    %120 = vmatpush.msra.mxu0 0.0
    %121 = vmatpush.msra.mxu0 0.0
    %122 = vmatpush.msra.mxu0 0.0
    %123 = vmatpush.msra.mxu0 0.0
    %124 = vmatpush.msra.mxu0 %v100
    %125 = vmatpush.msra.mxu0 %v98
    %126 = vmatmul.f32.gmra.mxu0 %v108
    %v127 = vpop.f32.mrf.mxu0
    %v128 = vadd.f32 %v105, %v127
    %129 = vdwg.mxu0
    %v130 = vld [vmem:[%s2] sm:$0x1]
    %vm131 = vcmask 261120
    %v133 = vsel %vm131, %v130, 0
    %135 = vmatpush.msra.mxu0 0.0
    %136 = vmatpush.msra.mxu0 0.0
    %137 = vmatpush.msra.mxu0 0.0
    %138 = vmatpush.msra.mxu0 0.0
    %139 = vmatpush.msra.mxu0 0.0
    %140 = vmatpush.msra.mxu0 0.0
    %141 = vmatpush.msra.mxu0 0.0
    %142 = vmatpush.msra.mxu0 0.0
    %143 = vmatpush.msra.mxu0 0.0
    %144 = vmatpush.msra.mxu0 0.0
    %145 = vmatpush.msra.mxu0 0.0
    %146 = vmatpush.msra.mxu0 0.0
    %147 = vmatpush.msra.mxu0 %v64
    %148 = vmatpush.msra.mxu0 %v63
    %149 = vmatpush.msra.mxu0 %v62
    %150 = vmatpush.msra.mxu0 %v61
    %151 = vmatmul.f32.gmra.mxu0 %v133
    %v152 = vpop.f32.mrf.mxu0
    %v153 = vadd.f32 0.0, %v152
    %154 = vdwg.mxu0
    %v155 = vadd.f32 %v92, %v153
    %v156 = vtanh.pop %v155
    %v158 = vsel %vm131, %v156, 0
    %160 = vmatpush.msra.mxu0 0.0
    %161 = vmatpush.msra.mxu0 0.0
    %162 = vmatpush.msra.mxu0 0.0
    %163 = vmatpush.msra.mxu0 0.0
    %164 = vmatpush.msra.mxu0 0.0
    %165 = vmatpush.msra.mxu0 0.0
    %166 = vmatpush.msra.mxu0 0.0
    %167 = vmatpush.msra.mxu0 0.0
    %168 = vmatpush.msra.mxu0 0.0
    %169 = vmatpush.msra.mxu0 0.0
    %170 = vmatpush.msra.mxu0 0.0
    %171 = vmatpush.msra.mxu0 0.0
    %172 = vmatpush.msra.mxu0 %v64
    %173 = vmatpush.msra.mxu0 %v63
    %174 = vmatpush.msra.mxu0 %v62
    %175 = vmatpush.msra.mxu0 %v61
    %176 = vmatmul.f32.gmra.mxu0 %v158
    %v177 = vpop.f32.mrf.mxu0
    %v178 = vadd.f32 0.0, %v177
    %179 = vdwg.mxu0
    %v181 = vrot.slane %v178, 7
    %v183 = vadd.f32 %v92, %v181
    %v184 = vtanh.pop %v183
    %v186 = vrot.slane %v184, 1
    %v187 = vsel %vm131, %v186, 0
    %189 = vmatpush.msra.mxu0 0.0
    %190 = vmatpush.msra.mxu0 0.0
    %191 = vmatpush.msra.mxu0 0.0
    %192 = vmatpush.msra.mxu0 0.0
    %193 = vmatpush.msra.mxu0 0.0
    %194 = vmatpush.msra.mxu0 0.0
    %195 = vmatpush.msra.mxu0 0.0
    %196 = vmatpush.msra.mxu0 0.0
    %197 = vmatpush.msra.mxu0 0.0
    %198 = vmatpush.msra.mxu0 0.0
    %199 = vmatpush.msra.mxu0 0.0
    %200 = vmatpush.msra.mxu0 0.0
    %201 = vmatpush.msra.mxu0 %v64
    %202 = vmatpush.msra.mxu0 %v63
    %203 = vmatpush.msra.mxu0 %v62
    %204 = vmatpush.msra.mxu0 %v61
    %205 = vmatmul.f32.gmra.mxu0 %v187
    %v206 = vpop.f32.mrf.mxu0
    %v207 = vadd.f32 0.0, %v206
    %208 = vdwg.mxu0
    %v210 = vrot.slane %v207, 6
    %v212 = vadd.f32 %v92, %v210
    %v213 = vtanh.pop %v212
    %v215 = vrot.slane %v213, 2
    %v216 = vsel %vm131, %v215, 0
    %218 = vmatpush.msra.mxu0 0.0
    %219 = vmatpush.msra.mxu0 0.0
    %220 = vmatpush.msra.mxu0 0.0
    %221 = vmatpush.msra.mxu0 0.0
    %222 = vmatpush.msra.mxu0 0.0
    %223 = vmatpush.msra.mxu0 0.0
    %224 = vmatpush.msra.mxu0 0.0
    %225 = vmatpush.msra.mxu0 0.0
    %226 = vmatpush.msra.mxu0 0.0
    %227 = vmatpush.msra.mxu0 0.0
    %228 = vmatpush.msra.mxu0 0.0
    %229 = vmatpush.msra.mxu0 0.0
    %230 = vmatpush.msra.mxu0 %v64
    %231 = vmatpush.msra.mxu0 %v63
    %232 = vmatpush.msra.mxu0 %v62
    %233 = vmatpush.msra.mxu0 %v61
    %234 = vmatmul.f32.gmra.mxu0 %v216
    %v235 = vpop.f32.mrf.mxu0
    %v236 = vadd.f32 0.0, %v235
    %237 = vdwg.mxu0
    %v239 = vrot.slane %v236, 5
    %v241 = vadd.f32 %v92, %v239
    %v242 = vtanh.pop %v241
    %v244 = vrot.slane %v242, 3
    %v245 = vsel %vm131, %v244, 0
    %247 = vmatpush.msra.mxu0 0.0
    %248 = vmatpush.msra.mxu0 0.0
    %249 = vmatpush.msra.mxu0 0.0
    %250 = vmatpush.msra.mxu0 0.0
    %251 = vmatpush.msra.mxu0 0.0
    %252 = vmatpush.msra.mxu0 0.0
    %253 = vmatpush.msra.mxu0 0.0
    %254 = vmatpush.msra.mxu0 0.0
    %255 = vmatpush.msra.mxu0 0.0
    %256 = vmatpush.msra.mxu0 0.0
    %257 = vmatpush.msra.mxu0 0.0
    %258 = vmatpush.msra.mxu0 0.0
    %259 = vmatpush.msra.mxu0 %v64
    %260 = vmatpush.msra.mxu0 %v63
    %261 = vmatpush.msra.mxu0 %v62
    %262 = vmatpush.msra.mxu0 %v61
    %263 = vmatmul.f32.gmra.mxu0 %v245
    %v264 = vpop.f32.mrf.mxu0
    %v265 = vadd.f32 0.0, %v264
    %266 = vdwg.mxu0
    %v268 = vrot.slane %v265, 4
    %v270 = vadd.f32 %v92, %v268
    %v271 = vtanh.pop %v270
    %v273 = vrot.slane %v271, 4
    %v274 = vsel %vm131, %v273, 0
    %276 = vmatpush.msra.mxu0 0.0
    %277 = vmatpush.msra.mxu0 0.0
    %278 = vmatpush.msra.mxu0 0.0
    %279 = vmatpush.msra.mxu0 0.0
    %280 = vmatpush.msra.mxu0 0.0
    %281 = vmatpush.msra.mxu0 0.0
    %282 = vmatpush.msra.mxu0 0.0
    %283 = vmatpush.msra.mxu0 0.0
    %284 = vmatpush.msra.mxu0 0.0
    %285 = vmatpush.msra.mxu0 0.0
    %286 = vmatpush.msra.mxu0 0.0
    %287 = vmatpush.msra.mxu0 0.0
    %288 = vmatpush.msra.mxu0 %v64
    %289 = vmatpush.msra.mxu0 %v63
    %290 = vmatpush.msra.mxu0 %v62
    %291 = vmatpush.msra.mxu0 %v61
    %292 = vmatmul.f32.gmra.mxu0 %v274
    %v293 = vpop.f32.mrf.mxu0
    %v294 = vadd.f32 0.0, %v293
    %295 = vdwg.mxu0
    %v297 = vrot.slane %v294, 3
    %v299 = vadd.f32 %v92, %v297
    %v300 = vtanh.pop %v299
    %v302 = vrot.slane %v300, 5
    %v303 = vsel %vm131, %v302, 0
    %305 = vmatpush.msra.mxu0 0.0
    %306 = vmatpush.msra.mxu0 0.0
    %307 = vmatpush.msra.mxu0 0.0
    %308 = vmatpush.msra.mxu0 0.0
    %309 = vmatpush.msra.mxu0 0.0
    %310 = vmatpush.msra.mxu0 0.0
    %311 = vmatpush.msra.mxu0 0.0
    %312 = vmatpush.msra.mxu0 0.0
    %313 = vmatpush.msra.mxu0 0.0
    %314 = vmatpush.msra.mxu0 0.0
    %315 = vmatpush.msra.mxu0 0.0
    %316 = vmatpush.msra.mxu0 0.0
    %317 = vmatpush.msra.mxu0 %v64
    %318 = vmatpush.msra.mxu0 %v63
    %319 = vmatpush.msra.mxu0 %v62
    %320 = vmatpush.msra.mxu0 %v61
    %321 = vmatmul.f32.gmra.mxu0 %v303
    %v322 = vpop.f32.mrf.mxu0
    %v323 = vadd.f32 0.0, %v322
    %324 = vdwg.mxu0
    %v326 = vrot.slane %v323, 2
    %v328 = vadd.f32 %v92, %v326
    %v329 = vtanh.pop %v328
    %v331 = vrot.slane %v329, 6
    %v332 = vsel %vm131, %v331, 0
    %334 = vmatpush.msra.mxu0 0.0
    %335 = vmatpush.msra.mxu0 0.0
    %336 = vmatpush.msra.mxu0 0.0
    %337 = vmatpush.msra.mxu0 0.0
    %338 = vmatpush.msra.mxu0 0.0
    %339 = vmatpush.msra.mxu0 0.0
    %340 = vmatpush.msra.mxu0 0.0
    %341 = vmatpush.msra.mxu0 0.0
    %342 = vmatpush.msra.mxu0 0.0
    %343 = vmatpush.msra.mxu0 0.0
    %344 = vmatpush.msra.mxu0 0.0
    %345 = vmatpush.msra.mxu0 0.0
    %346 = vmatpush.msra.mxu0 %v64
    %347 = vmatpush.msra.mxu0 %v63
    %348 = vmatpush.msra.mxu0 %v62
    %349 = vmatpush.msra.mxu0 %v61
    %350 = vmatmul.f32.gmra.mxu0 %v332
    %v351 = vpop.f32.mrf.mxu0
    %v352 = vadd.f32 0.0, %v351
    %353 = vdwg.mxu0
    %v355 = vrot.slane %v352, 1
    %v357 = vadd.f32 %v92, %v355
    %v358 = vtanh.pop %v357
    %v360 = vrot.slane %v358, 7
    %365 = vrot.lane.b32.xlu0 %v61, 96
    %v366 = vpop.permute.xlu0 %365
    %367 = vrot.lane.b32.xlu0 %v62, 96
    %v368 = vpop.permute.xlu0 %367
    %369 = vrot.lane.b32.xlu0 %v63, 96
    %v370 = vpop.permute.xlu0 %369
    %371 = vrot.lane.b32.xlu0 %v64, 96
    %v372 = vpop.permute.xlu0 %371
    %v377 = vsel %vm131, %v360, 0
    %379 = vmatpush.msra.mxu0 0.0
    %380 = vmatpush.msra.mxu0 0.0
    %381 = vmatpush.msra.mxu0 0.0
    %382 = vmatpush.msra.mxu0 0.0
    %383 = vmatpush.msra.mxu0 0.0
    %384 = vmatpush.msra.mxu0 0.0
    %385 = vmatpush.msra.mxu0 0.0
    %386 = vmatpush.msra.mxu0 0.0
    %387 = vmatpush.msra.mxu0 0.0
    %388 = vmatpush.msra.mxu0 0.0
    %389 = vmatpush.msra.mxu0 0.0
    %390 = vmatpush.msra.mxu0 0.0
    %391 = vmatpush.msra.mxu0 %v372
    %392 = vmatpush.msra.mxu0 %v370
    %393 = vmatpush.msra.mxu0 %v368
    %394 = vmatpush.msra.mxu0 %v366
    %395 = vmatmul.f32.gmra.mxu0 %v377
    %v396 = vpop.f32.mrf.mxu0
    %v397 = vadd.f32 0.0, %v396
    %398 = vdwg.mxu0
    %v399 = vadd.f32 %v128, %v397
    %v400 = vtanh.pop %v399
    %v402 = vsel %vm131, %v400, 0
    %404 = vmatpush.msra.mxu0 0.0
    %405 = vmatpush.msra.mxu0 0.0
    %406 = vmatpush.msra.mxu0 0.0
    %407 = vmatpush.msra.mxu0 0.0
    %408 = vmatpush.msra.mxu0 0.0
    %409 = vmatpush.msra.mxu0 0.0
    %410 = vmatpush.msra.mxu0 0.0
    %411 = vmatpush.msra.mxu0 0.0
    %412 = vmatpush.msra.mxu0 0.0
    %413 = vmatpush.msra.mxu0 0.0
    %414 = vmatpush.msra.mxu0 0.0
    %415 = vmatpush.msra.mxu0 0.0
    %416 = vmatpush.msra.mxu0 %v372
    %417 = vmatpush.msra.mxu0 %v370
    %418 = vmatpush.msra.mxu0 %v368
    %419 = vmatpush.msra.mxu0 %v366
    %420 = vmatmul.f32.gmra.mxu0 %v402
    %v421 = vpop.f32.mrf.mxu0
    %v422 = vadd.f32 0.0, %v421
    %423 = vdwg.mxu0
    %v425 = vrot.slane %v422, 7
    %v427 = vadd.f32 %v128, %v425
    %v428 = vtanh.pop %v427
    %v430 = vrot.slane %v428, 1
    %v431 = vsel %vm131, %v430, 0
    %433 = vmatpush.msra.mxu0 0.0
    %434 = vmatpush.msra.mxu0 0.0
    %435 = vmatpush.msra.mxu0 0.0
    %436 = vmatpush.msra.mxu0 0.0
    %437 = vmatpush.msra.mxu0 0.0
    %438 = vmatpush.msra.mxu0 0.0
    %439 = vmatpush.msra.mxu0 0.0
    %440 = vmatpush.msra.mxu0 0.0
    %441 = vmatpush.msra.mxu0 0.0
    %442 = vmatpush.msra.mxu0 0.0
    %443 = vmatpush.msra.mxu0 0.0
    %444 = vmatpush.msra.mxu0 0.0
    %445 = vmatpush.msra.mxu0 %v372
    %446 = vmatpush.msra.mxu0 %v370
    %447 = vmatpush.msra.mxu0 %v368
    %448 = vmatpush.msra.mxu0 %v366
    %449 = vmatmul.f32.gmra.mxu0 %v431
    %v450 = vpop.f32.mrf.mxu0
    %v451 = vadd.f32 0.0, %v450
    %452 = vdwg.mxu0
    %v454 = vrot.slane %v451, 6
    %v456 = vadd.f32 %v128, %v454
    %v457 = vtanh.pop %v456
    %v459 = vrot.slane %v457, 2
    %v460 = vsel %vm131, %v459, 0
    %462 = vmatpush.msra.mxu0 0.0
    %463 = vmatpush.msra.mxu0 0.0
    %464 = vmatpush.msra.mxu0 0.0
    %465 = vmatpush.msra.mxu0 0.0
    %466 = vmatpush.msra.mxu0 0.0
    %467 = vmatpush.msra.mxu0 0.0
    %468 = vmatpush.msra.mxu0 0.0
    %469 = vmatpush.msra.mxu0 0.0
    %470 = vmatpush.msra.mxu0 0.0
    %471 = vmatpush.msra.mxu0 0.0
    %472 = vmatpush.msra.mxu0 0.0
    %473 = vmatpush.msra.mxu0 0.0
    %474 = vmatpush.msra.mxu0 %v372
    %475 = vmatpush.msra.mxu0 %v370
    %476 = vmatpush.msra.mxu0 %v368
    %477 = vmatpush.msra.mxu0 %v366
    %478 = vmatmul.f32.gmra.mxu0 %v460
    %v479 = vpop.f32.mrf.mxu0
    %v480 = vadd.f32 0.0, %v479
    %481 = vdwg.mxu0
    %v483 = vrot.slane %v480, 5
    %v485 = vadd.f32 %v128, %v483
    %v486 = vtanh.pop %v485
    %v488 = vrot.slane %v486, 3
    %v489 = vsel %vm131, %v488, 0
    %491 = vmatpush.msra.mxu0 0.0
    %492 = vmatpush.msra.mxu0 0.0
    %493 = vmatpush.msra.mxu0 0.0
    %494 = vmatpush.msra.mxu0 0.0
    %495 = vmatpush.msra.mxu0 0.0
    %496 = vmatpush.msra.mxu0 0.0
    %497 = vmatpush.msra.mxu0 0.0
    %498 = vmatpush.msra.mxu0 0.0
    %499 = vmatpush.msra.mxu0 0.0
    %500 = vmatpush.msra.mxu0 0.0
    %501 = vmatpush.msra.mxu0 0.0
    %502 = vmatpush.msra.mxu0 0.0
    %503 = vmatpush.msra.mxu0 %v372
    %504 = vmatpush.msra.mxu0 %v370
    %505 = vmatpush.msra.mxu0 %v368
    %506 = vmatpush.msra.mxu0 %v366
    %507 = vmatmul.f32.gmra.mxu0 %v489
    %v508 = vpop.f32.mrf.mxu0
    %v509 = vadd.f32 0.0, %v508
    %510 = vdwg.mxu0
    %v512 = vrot.slane %v509, 4
    %v514 = vadd.f32 %v128, %v512
    %v515 = vtanh.pop %v514
    %v517 = vrot.slane %v515, 4
    %v518 = vsel %vm131, %v517, 0
    %520 = vmatpush.msra.mxu0 0.0
    %521 = vmatpush.msra.mxu0 0.0
    %522 = vmatpush.msra.mxu0 0.0
    %523 = vmatpush.msra.mxu0 0.0
    %524 = vmatpush.msra.mxu0 0.0
    %525 = vmatpush.msra.mxu0 0.0
    %526 = vmatpush.msra.mxu0 0.0
    %527 = vmatpush.msra.mxu0 0.0
    %528 = vmatpush.msra.mxu0 0.0
    %529 = vmatpush.msra.mxu0 0.0
    %530 = vmatpush.msra.mxu0 0.0
    %531 = vmatpush.msra.mxu0 0.0
    %532 = vmatpush.msra.mxu0 %v372
    %533 = vmatpush.msra.mxu0 %v370
    %534 = vmatpush.msra.mxu0 %v368
    %535 = vmatpush.msra.mxu0 %v366
    %536 = vmatmul.f32.gmra.mxu0 %v518
    %v537 = vpop.f32.mrf.mxu0
    %v538 = vadd.f32 0.0, %v537
    %539 = vdwg.mxu0
    %v541 = vrot.slane %v538, 3
    %v543 = vadd.f32 %v128, %v541
    %v544 = vtanh.pop %v543
    %v546 = vrot.slane %v544, 5
    %v547 = vsel %vm131, %v546, 0
    %549 = vmatpush.msra.mxu0 0.0
    %550 = vmatpush.msra.mxu0 0.0
    %551 = vmatpush.msra.mxu0 0.0
    %552 = vmatpush.msra.mxu0 0.0
    %553 = vmatpush.msra.mxu0 0.0
    %554 = vmatpush.msra.mxu0 0.0
    %555 = vmatpush.msra.mxu0 0.0
    %556 = vmatpush.msra.mxu0 0.0
    %557 = vmatpush.msra.mxu0 0.0
    %558 = vmatpush.msra.mxu0 0.0
    %559 = vmatpush.msra.mxu0 0.0
    %560 = vmatpush.msra.mxu0 0.0
    %561 = vmatpush.msra.mxu0 %v372
    %562 = vmatpush.msra.mxu0 %v370
    %563 = vmatpush.msra.mxu0 %v368
    %564 = vmatpush.msra.mxu0 %v366
    %565 = vmatmul.f32.gmra.mxu0 %v547
    %v566 = vpop.f32.mrf.mxu0
    %v567 = vadd.f32 0.0, %v566
    %568 = vdwg.mxu0
    %v570 = vrot.slane %v567, 2
    %v572 = vadd.f32 %v128, %v570
    %v573 = vtanh.pop %v572
    %v575 = vrot.slane %v573, 6
    %v576 = vsel %vm131, %v575, 0
    %578 = vmatpush.msra.mxu0 0.0
    %579 = vmatpush.msra.mxu0 0.0
    %580 = vmatpush.msra.mxu0 0.0
    %581 = vmatpush.msra.mxu0 0.0
    %582 = vmatpush.msra.mxu0 0.0
    %583 = vmatpush.msra.mxu0 0.0
    %584 = vmatpush.msra.mxu0 0.0
    %585 = vmatpush.msra.mxu0 0.0
    %586 = vmatpush.msra.mxu0 0.0
    %587 = vmatpush.msra.mxu0 0.0
    %588 = vmatpush.msra.mxu0 0.0
    %589 = vmatpush.msra.mxu0 0.0
    %590 = vmatpush.msra.mxu0 %v372
    %591 = vmatpush.msra.mxu0 %v370
    %592 = vmatpush.msra.mxu0 %v368
    %593 = vmatpush.msra.mxu0 %v366
    %594 = vmatmul.f32.gmra.mxu0 %v576
    %v595 = vpop.f32.mrf.mxu0
    %v596 = vadd.f32 0.0, %v595
    %597 = vdwg.mxu0
    %v599 = vrot.slane %v596, 1
    %v601 = vadd.f32 %v128, %v599
    %v602 = vtanh.pop %v601
    %vm603 = vcmask 1040384
    %v604 = vsel %vm603, %v156, %v184
    %vm605 = vcmask 1041408
    %v606 = vsel %vm605, %v604, %v213
    %vm607 = vcmask 1042432
    %v608 = vsel %vm607, %v606, %v242
    %vm609 = vcmask 1043456
    %v610 = vsel %vm609, %v608, %v271
    %vm611 = vcmask 1044480
    %v612 = vsel %vm611, %v610, %v300
    %vm613 = vcmask 1045504
    %v614 = vsel %vm613, %v612, %v329
    %vm615 = vcmask 1046528
    %v616 = vsel %vm615, %v614, %v358
    %v617 = vsel %vm603, %v400, %v428
    %v618 = vsel %vm605, %v617, %v457
    %v619 = vsel %vm607, %v618, %v486
    %v620 = vsel %vm609, %v619, %v515
    %v621 = vsel %vm611, %v620, %v544
    %v622 = vsel %vm613, %v621, %v573
    %v623 = vsel %vm615, %v622, %v602
    %624 = vrot.lane.b32.xlu0 %v61, 64
    %v625 = vpop.permute.xlu0 %624
    %626 = vrot.lane.b32.xlu0 %v62, 64
    %v627 = vpop.permute.xlu0 %626
    %628 = vrot.lane.b32.xlu0 %v63, 64
    %v629 = vpop.permute.xlu0 %628
    %630 = vrot.lane.b32.xlu0 %v64, 64
    %v631 = vpop.permute.xlu0 %630
    %636 = vrot.lane.b32.xlu0 %v69, 64
    %v637 = vpop.permute.xlu0 %636
    %v640 = vsel %vm131, %v616, 0
    %642 = vmatpush.msra.mxu0 0.0
    %643 = vmatpush.msra.mxu0 0.0
    %644 = vmatpush.msra.mxu0 0.0
    %645 = vmatpush.msra.mxu0 0.0
    %646 = vmatpush.msra.mxu0 0.0
    %647 = vmatpush.msra.mxu0 0.0
    %648 = vmatpush.msra.mxu0 0.0
    %649 = vmatpush.msra.mxu0 0.0
    %650 = vmatpush.msra.mxu0 0.0
    %651 = vmatpush.msra.mxu0 0.0
    %652 = vmatpush.msra.mxu0 0.0
    %653 = vmatpush.msra.mxu0 0.0
    %654 = vmatpush.msra.mxu0 %v631
    %655 = vmatpush.msra.mxu0 %v629
    %656 = vmatpush.msra.mxu0 %v627
    %657 = vmatpush.msra.mxu0 %v625
    %658 = vmatmul.f32.gmra.mxu0 %v640
    %v659 = vpop.f32.mrf.mxu0
    %v660 = vadd.f32 %v637, %v659
    %661 = vdwg.mxu0
    %v663 = vsel %vm131, %v623, 0
    %v666 = vsel %vm131, %v660, 0
    %668 = vmatpush.xpose.msra.mxu0 0.0
    %669 = vmatpush.xpose.msra.mxu0 0.0
    %670 = vmatpush.xpose.msra.mxu0 0.0
    %671 = vmatpush.xpose.msra.mxu0 0.0
    %672 = vmatpush.xpose.msra.mxu0 0.0
    %673 = vmatpush.xpose.msra.mxu0 0.0
    %674 = vmatpush.xpose.msra.mxu0 0.0
    %675 = vmatpush.xpose.msra.mxu0 0.0
    %676 = vmatpush.xpose.msra.mxu0 0.0
    %677 = vmatpush.xpose.msra.mxu0 0.0
    %678 = vmatpush.xpose.msra.mxu0 0.0
    %679 = vmatpush.xpose.msra.mxu0 0.0
    %680 = vmatpush.xpose.msra.mxu0 0.0
    %681 = vmatpush.xpose.msra.mxu0 0.0
    %682 = vmatpush.xpose.msra.mxu0 0.0
    %683 = vmatpush.xpose.msra.mxu0 %v666
    %684 = vmatmul.f32.gmra.mxu0 %v663
    %v685 = vpop.f32.mrf.mxu0
    %v686 = vadd.f32 0.0, %v685
    %687 = vdwg.mxu0
    %vm688 = vcmask 64512
    %v689 = vsel %vm688, %v686, -inf
    %690 = vmax.xlane.f32.xlu0 %v689
    %v691 = vpop.xlane.xlu0 %690
    %v692 = vsub.f32 %v686, %v691
    %v693 = vmul.f32 %v692, 1.442695
    %v694 = vpow.pop %v693
    %v695 = vsel %vm688, %v694, 0.0
    %696 = vadd.xlane.f32.xlu0 %v695
    %v697 = vpop.xlane.xlu0 %696
    %v698 = vrcp.pop %v697
    %v699 = vmul.f32 %v697, %v698
    %v700 = vsub.f32 1.0, %v699
    %v701 = vmul.f32 %v698, %v700
    %v702 = vadd.f32 %v698, %v701
    %vm703 = vweird.f32 %v697
    %vm704 = vweird.f32 %v698
    %vm705 = vmor %vm703, %vm704
    %v706 = vsel %vm705, %v698, %v702
    %v707 = vand.u32 2147483647, %v697
    %vm708 = vcmp.eq.f32.partialorder %v707, 8.507059e+37
    %v709 = vand.u32 %v697, 2147483648
    %v710 = vor.u32 1.1754944e-38, %v709
    %v711 = vsel %vm708, %v710, %v706
    %v712 = vmul.f32 %v694, %v711
    %v714 = vsel %vm688, %v712, 0
    %716 = vmatpush.msra.mxu0 0.0
    %717 = vmatpush.msra.mxu0 0.0
    %718 = vmatpush.msra.mxu0 0.0
    %719 = vmatpush.msra.mxu0 0.0
    %720 = vmatpush.msra.mxu0 0.0
    %721 = vmatpush.msra.mxu0 0.0
    %722 = vmatpush.msra.mxu0 0.0
    %723 = vmatpush.msra.mxu0 0.0
    %724 = vmatpush.msra.mxu0 0.0
    %725 = vmatpush.msra.mxu0 0.0
    %726 = vmatpush.msra.mxu0 0.0
    %727 = vmatpush.msra.mxu0 0.0
    %728 = vmatpush.msra.mxu0 0.0
    %729 = vmatpush.msra.mxu0 0.0
    %730 = vmatpush.msra.mxu0 0.0
    %731 = vmatpush.msra.mxu0 %v616
    %732 = vmatmul.f32.gmra.mxu0 %v714
    %v733 = vpop.f32.mrf.mxu0
    %v734 = vadd.f32 0.0, %v733
    %735 = vdwg.mxu0
    %736 = vrot.lane.b32.xlu0 %v61, 16
    %v737 = vpop.permute.xlu0 %736
    %738 = vrot.lane.b32.xlu0 %v62, 16
    %v739 = vpop.permute.xlu0 %738
    %740 = vrot.lane.b32.xlu0 %v63, 16
    %v741 = vpop.permute.xlu0 %740
    %742 = vrot.lane.b32.xlu0 %v64, 16
    %v743 = vpop.permute.xlu0 %742
    %v749 = vsel %vm131, %v734, 0
    %751 = vmatpush.msra.mxu0 0.0
    %752 = vmatpush.msra.mxu0 0.0
    %753 = vmatpush.msra.mxu0 0.0
    %754 = vmatpush.msra.mxu0 0.0
    %755 = vmatpush.msra.mxu0 0.0
    %756 = vmatpush.msra.mxu0 0.0
    %757 = vmatpush.msra.mxu0 0.0
    %758 = vmatpush.msra.mxu0 0.0
    %759 = vmatpush.msra.mxu0 0.0
    %760 = vmatpush.msra.mxu0 0.0
    %761 = vmatpush.msra.mxu0 0.0
    %762 = vmatpush.msra.mxu0 0.0
    %763 = vmatpush.msra.mxu0 %v743
    %764 = vmatpush.msra.mxu0 %v741
    %765 = vmatpush.msra.mxu0 %v739
    %766 = vmatpush.msra.mxu0 %v737
    %767 = vmatmul.f32.gmra.mxu0 %v749
    %v768 = vpop.f32.mrf.mxu0
    %v769 = vadd.f32 0.0, %v768
    %770 = vdwg.mxu0
    %771 = vrot.lane.b32.xlu0 %v61, 32
    %v772 = vpop.permute.xlu0 %771
    %773 = vrot.lane.b32.xlu0 %v62, 32
    %v774 = vpop.permute.xlu0 %773
    %775 = vrot.lane.b32.xlu0 %v63, 32
    %v776 = vpop.permute.xlu0 %775
    %777 = vrot.lane.b32.xlu0 %v64, 32
    %v778 = vpop.permute.xlu0 %777
    %783 = vmatpush.msra.mxu0 0.0
    %784 = vmatpush.msra.mxu0 0.0
    %785 = vmatpush.msra.mxu0 0.0
    %786 = vmatpush.msra.mxu0 0.0
    %787 = vmatpush.msra.mxu0 0.0
    %788 = vmatpush.msra.mxu0 0.0
    %789 = vmatpush.msra.mxu0 0.0
    %790 = vmatpush.msra.mxu0 0.0
    %791 = vmatpush.msra.mxu0 0.0
    %792 = vmatpush.msra.mxu0 0.0
    %793 = vmatpush.msra.mxu0 0.0
    %794 = vmatpush.msra.mxu0 0.0
    %795 = vmatpush.msra.mxu0 %v778
    %796 = vmatpush.msra.mxu0 %v776
    %797 = vmatpush.msra.mxu0 %v774
    %798 = vmatpush.msra.mxu0 %v772
    %799 = vmatmul.f32.gmra.mxu0 %v663
    %v800 = vpop.f32.mrf.mxu0
    %v801 = vadd.f32 %v769, %v800
    %802 = vdwg.mxu0
    %803 = vrot.lane.b32.xlu0 %v69, 32
    %v804 = vpop.permute.xlu0 %803
    %v806 = vadd.f32 %v801, %v804
    %807 = vrot.lane.b32.xlu0 %v712, 16
    %v808 = vpop.permute.xlu0 %807
    %v810 = vsel %vm70, %v806, %v808
    %vm811 = vcmask 195584
    %v812 = vsel %vm811, %v810, 0.0
    %813 = vst [vmem:[#allocation8] sm:$0xff] %v812
    // Predicated region
    $region30: #{tpu_custom_call.1} parent=1 // pred_check
      _
    $region31: #{tpu_custom_call.1} parent=1 // pred_check_branch
      %815 = sbr.rel (0) target = $region33
    $region32: #{tpu_custom_call.1} parent=1 // pred_region
      %817 = vsyncadd [#allocation4], 0
      %s819 = sshll.u32 [#allocation8], 4
      %s820 = int_to_ptr.vmem [resolvable:$true] %s819
      %s821 = sshll.u32 %s4, 4
      %s822 = int_to_ptr.hbm [resolvable:$true] %s821
      %824 = dma.vmem_to_hbm [thread:$0]  %s820, 128, %s822, [#allocation4]
    $region33: #{tpu_custom_call.1} parent=1 // pred_fallthru
      _
    // Predicated region
    $region34: #{tpu_custom_call.1} parent=1 // pred_check
      _
    $region35: #{tpu_custom_call.1} parent=1 // pred_check_branch
      %826 = sbr.rel (0) target = $region37
    $region36: #{tpu_custom_call.1} parent=1 // pred_region
      %828 = dma.done [#allocation4], 128
    $region37: #{tpu_custom_call.1} parent=1 // pred_fallthru
      _
    %829 = vsyncpa [#allocation3], 1
    %830 = vsyncpa [#allocation6], 1
    %831 = vsyncpa [#allocation4], 1

</llo_original>
